<compile_context>
chip_gen: v7x
topology: tpu7x:2x2x1
jax: 0.10.0
libtpu: 0.0.40
codegen_flags: <defaults>
</compile_context>

<pallas_src>
import jax
import jax.numpy as jnp
from jax import lax
from jax.experimental import pallas as pl
from jax.experimental.pallas import tpu as pltpu


def mlstm_kernel(x_ref, wih_ref, whh_ref, b_ref, wlin_ref, blin_ref, out_ref, xw_ref):
    # x_ref   : (T, input_dim)     VMEM
    # wih_ref : (input_dim, 4H)    VMEM   W_ih^T  (g-gate columns pre-scaled by 2)
    # whh_ref : (H, 4H)            VMEM   W_hh^T  (g-gate columns pre-scaled by 2)
    # b_ref   : (1, 4H)            VMEM   b_ih + b_hh (g columns pre-scaled by 2)
    # wlin_ref: (output_dim, H)    VMEM   fc weight (not transposed)
    # blin_ref: (output_dim, 1)    VMEM   fc bias
    # out_ref : (output_dim, 1)    VMEM
    # xw_ref  : (T, 4H)            VMEM scratch — precomputed input projection
    T = x_ref.shape[0]
    H = whh_ref.shape[0]

    # Hoisted input projection: one batched (T, 4H) MXU matmul with bias folded in.
    xw_ref[...] = (
        jnp.dot(x_ref[...], wih_ref[...], preferred_element_type=jnp.float32)
        + b_ref[...]
    )

    whh = whh_ref[...]

    def step(t, carry):
        h, c = carry
        gates = xw_ref[pl.ds(t, 1), :] + jnp.dot(
            h, whh, preferred_element_type=jnp.float32
        )                                                    # (1, 4H)
        # One full-width EUP sigmoid for all four gates. The g-gate pre-activation
        # was pre-scaled by 2, so tanh(g) = 2*sigmoid(2g) - 1 on the g lanes.
        s = jax.nn.sigmoid(gates)
        i_g = s[:, 0 * H:1 * H]
        f_g = s[:, 1 * H:2 * H]
        g_a = 2.0 * s[:, 2 * H:3 * H] - 1.0
        o_g = s[:, 3 * H:4 * H]
        c_new = f_g * c + i_g * g_a
        h_new = o_g * jnp.tanh(c_new)
        return (h_new, c_new)

    h0 = jnp.zeros((1, H), jnp.float32)
    c0 = jnp.zeros((1, H), jnp.float32)
    # Fully unrolled recurrence (T is static and small).
    h_T, _ = lax.fori_loop(0, T, step, (h0, c0), unroll=True)

    # Many-to-one head on the VPU: multiply + lane reduce (output_dim tiny).
    out_ref[...] = (
        jnp.sum(h_T * wlin_ref[...], axis=-1, keepdims=True) + blin_ref[...]
    )


def mlstm_forward(input_seq, w_ih, w_hh, b_ih, b_hh, w_fc, b_fc):
    """input_seq: (1, T, input_dim) batch_first (batch=1, per the module's
    hidden_cell shape). Returns predictions of shape (1, output_dim)."""
    assert input_seq.shape[0] == 1, "module semantics imply batch=1"
    x = input_seq[0].astype(jnp.float32)                    # (T, input_dim)
    T, _ = x.shape
    H = w_hh.shape[1]
    output_dim = w_fc.shape[0]

    # Pre-scale the g-gate (columns 2H:3H) by 2 so the kernel can use a single
    # full-width sigmoid and recover tanh(g) = 2*sigmoid(2g) - 1.
    g_scale = jnp.ones((4 * H,), jnp.float32).at[2 * H:3 * H].set(2.0)

    wih_t = w_ih.T.astype(jnp.float32) * g_scale            # (input_dim, 4H)
    whh_t = w_hh.T.astype(jnp.float32) * g_scale            # (H, 4H)
    b = ((b_ih + b_hh).astype(jnp.float32) * g_scale).reshape(1, 4 * H)
    wlin = w_fc.astype(jnp.float32)                         # (output_dim, H)
    blin = b_fc.astype(jnp.float32).reshape(output_dim, 1)

    vmem = pl.BlockSpec(memory_space=pltpu.MemorySpace.VMEM)
    out = pl.pallas_call(
        mlstm_kernel,
        out_shape=jax.ShapeDtypeStruct((output_dim, 1), jnp.float32),
        in_specs=[vmem] * 6,
        out_specs=vmem,
        scratch_shapes=[pltpu.VMEM((T, 4 * H), jnp.float32)],
    )(x, wih_t, whh_t, b, wlin, blin)
    return out[:, 0].reshape(1, output_dim)


def mlstm_reference(input_seq, w_ih, w_hh, b_ih, b_hh, w_fc, b_fc):
    """Pure-JAX reference matching torch.nn.LSTM + Linear (many-to-one)."""
    x = input_seq[0].astype(jnp.float32)
    H = w_hh.shape[1]
    h = jnp.zeros((H,), jnp.float32)
    c = jnp.zeros((H,), jnp.float32)

    def step(carry, x_t):
        h, c = carry
        gates = w_ih @ x_t + b_ih + w_hh @ h + b_hh
        i, f, g, o = jnp.split(gates, 4)
        c = jax.nn.sigmoid(f) * c + jax.nn.sigmoid(i) * jnp.tanh(g)
        h = jax.nn.sigmoid(o) * jnp.tanh(c)
        return (h, c), None

    (h, c), _ = lax.scan(step, (h, c), x)
    return (w_fc @ h + b_fc).reshape(1, -1)


if __name__ == "__main__":
    # Module config (univariate series; hidden picked TPU-friendly and small).
    input_dim, hidden, output_dim, T = 1, 32, 1, 8

    key = jax.random.PRNGKey(0)
    ks = jax.random.split(key, 7)
    bound = 1.0 / jnp.sqrt(hidden)

    w_ih = jax.random.uniform(ks[0], (4 * hidden, input_dim), jnp.float32, -bound, bound)
    w_hh = jax.random.uniform(ks[1], (4 * hidden, hidden), jnp.float32, -bound, bound)
    b_ih = jax.random.uniform(ks[2], (4 * hidden,), jnp.float32, -bound, bound)
    b_hh = jax.random.uniform(ks[3], (4 * hidden,), jnp.float32, -bound, bound)
    w_fc = jax.random.uniform(ks[4], (output_dim, hidden), jnp.float32, -bound, bound)
    b_fc = jax.random.uniform(ks[5], (output_dim,), jnp.float32, -bound, bound)

    # Univariate time series, batch_first layout: (batch=1, seq=T, features=input_dim).
    x = jax.random.normal(ks[6], (1, T, input_dim), jnp.float32)

    pred = mlstm_forward(x, w_ih, w_hh, b_ih, b_hh, w_fc, b_fc)
    jax.block_until_ready(pred)

    ref = mlstm_reference(x, w_ih, w_hh, b_ih, b_hh, w_fc, b_fc)
    assert pred.shape == (1, output_dim)
    assert jnp.allclose(pred, ref, atol=1e-4, rtol=1e-4), (pred, ref)

    print("KERNEL_OK")
</pallas_src>

<mosaic_0001>
module attributes {stable_mosaic.version = 11 : i64} {
  func.func @mlstm_kernel(%arg0: memref<8x1xf32, #tpu.memory_space<vmem>>, %arg1: memref<1x128xf32, #tpu.memory_space<vmem>>, %arg2: memref<32x128xf32, #tpu.memory_space<vmem>>, %arg3: memref<1x128xf32, #tpu.memory_space<vmem>>, %arg4: memref<1x32xf32, #tpu.memory_space<vmem>>, %arg5: memref<1x1xf32, #tpu.memory_space<vmem>>, %arg6: memref<1x1xf32, #tpu.memory_space<vmem>>, %arg7: memref<8x128xf32, #tpu.memory_space<vmem>>) attributes {dimension_semantics = [], scalar_prefetch = 0 : i64, scratch_operands = 1 : i64, tpu.core_type = #tpu.core_type<tc>} {
    %c0 = arith.constant 0 : index
    %c0_0 = arith.constant 0 : index
    %0 = vector.load %arg0[%c0, %c0_0] : memref<8x1xf32, #tpu.memory_space<vmem>>, vector<8x1xf32>
    %c0_1 = arith.constant 0 : index
    %c0_2 = arith.constant 0 : index
    %1 = vector.load %arg1[%c0_1, %c0_2] : memref<1x128xf32, #tpu.memory_space<vmem>>, vector<1x128xf32>
    %cst = arith.constant dense<0.000000e+00> : vector<8x128xf32>
    %2 = tpu.matmul %0, %1, %cst {dimension_numbers = #tpu.dot_dimension_numbers<[1], [0], [0], [1], [0, 0, 1, 1], [], []>} : vector<8x1xf32>, vector<1x128xf32>, vector<8x128xf32> -> vector<8x128xf32>
    %c0_3 = arith.constant 0 : index
    %c0_4 = arith.constant 0 : index
    %3 = vector.load %arg3[%c0_3, %c0_4] : memref<1x128xf32, #tpu.memory_space<vmem>>, vector<1x128xf32>
    %4 = vector.broadcast %3 : vector<1x128xf32> to vector<8x128xf32>
    %5 = arith.addf %2, %4 : vector<8x128xf32>
    %c0_5 = arith.constant 0 : index
    %c0_6 = arith.constant 0 : index
    %6 = vector.load %arg7[%c0_5, %c0_6] : memref<8x128xf32, #tpu.memory_space<vmem>>, vector<8x128xf32>
    tpu.vector_store %arg7[%c0_5, %c0_6], %5 {strides = array<i32>} : memref<8x128xf32, #tpu.memory_space<vmem>>, vector<8x128xf32>,
    %c0_7 = arith.constant 0 : index
    %c0_8 = arith.constant 0 : index
    %7 = vector.load %arg2[%c0_7, %c0_8] : memref<32x128xf32, #tpu.memory_space<vmem>>, vector<32x128xf32>
    %cst_9 = arith.constant 0.000000e+00 : f32
    %8 = vector.broadcast %cst_9 : f32 to vector<1x32xf32>
    %cst_10 = arith.constant 0.000000e+00 : f32
    %9 = vector.broadcast %cst_10 : f32 to vector<1x32xf32>
    %c0_i32 = arith.constant 0 : i32
    %10 = arith.index_cast %c0_i32 : i32 to index
    %c0_11 = arith.constant 0 : index
    %11 = vector.load %arg7[%10, %c0_11] : memref<8x128xf32, #tpu.memory_space<vmem>>, vector<1x128xf32>
    %cst_12 = arith.constant dense<0.000000e+00> : vector<1x128xf32>
    %12 = tpu.matmul %8, %7, %cst_12 {dimension_numbers = #tpu.dot_dimension_numbers<[1], [0], [0], [1], [0, 0, 1, 1], [], []>} : vector<1x32xf32>, vector<32x128xf32>, vector<1x128xf32> -> vector<1x128xf32>
    %13 = arith.addf %11, %12 : vector<1x128xf32>
    %14 = arith.negf %13 : vector<1x128xf32>
    %15 = math.exp %14 : vector<1x128xf32>
    %cst_13 = arith.constant 1.000000e+00 : f32
    %16 = vector.broadcast %cst_13 : f32 to vector<1x128xf32>
    %17 = arith.addf %16, %15 : vector<1x128xf32>
    %18 = arith.divf %16, %17 : vector<1x128xf32>
    %19 = vector.extract_strided_slice %18 {offsets = [0, 0], sizes = [1, 32], strides = [1, 1]} : vector<1x128xf32> to vector<1x32xf32>
    %20 = vector.extract_strided_slice %18 {offsets = [0, 32], sizes = [1, 32], strides = [1, 1]} : vector<1x128xf32> to vector<1x32xf32>
    %21 = vector.extract_strided_slice %18 {offsets = [0, 64], sizes = [1, 32], strides = [1, 1]} : vector<1x128xf32> to vector<1x32xf32>
    %cst_14 = arith.constant 2.000000e+00 : f32
    %22 = vector.broadcast %cst_14 : f32 to vector<1x32xf32>
    %23 = arith.mulf %22, %21 : vector<1x32xf32>
    %cst_15 = arith.constant 1.000000e+00 : f32
    %24 = vector.broadcast %cst_15 : f32 to vector<1x32xf32>
    %25 = arith.subf %23, %24 : vector<1x32xf32>
    %26 = vector.extract_strided_slice %18 {offsets = [0, 96], sizes = [1, 32], strides = [1, 1]} : vector<1x128xf32> to vector<1x32xf32>
    %27 = arith.mulf %20, %9 : vector<1x32xf32>
    %28 = arith.mulf %19, %25 : vector<1x32xf32>
    %29 = arith.addf %27, %28 : vector<1x32xf32>
    %30 = math.tanh %29 : vector<1x32xf32>
    %31 = arith.mulf %26, %30 : vector<1x32xf32>
    %c1_i32 = arith.constant 1 : i32
    %32 = arith.index_cast %c1_i32 : i32 to index
    %c0_16 = arith.constant 0 : index
    %33 = vector.load %arg7[%32, %c0_16] : memref<8x128xf32, #tpu.memory_space<vmem>>, vector<1x128xf32>
    %cst_17 = arith.constant dense<0.000000e+00> : vector<1x128xf32>
    %34 = tpu.matmul %31, %7, %cst_17 {dimension_numbers = #tpu.dot_dimension_numbers<[1], [0], [0], [1], [0, 0, 1, 1], [], []>} : vector<1x32xf32>, vector<32x128xf32>, vector<1x128xf32> -> vector<1x128xf32>
    %35 = arith.addf %33, %34 : vector<1x128xf32>
    %36 = arith.negf %35 : vector<1x128xf32>
    %37 = math.exp %36 : vector<1x128xf32>
    %cst_18 = arith.constant 1.000000e+00 : f32
    %38 = vector.broadcast %cst_18 : f32 to vector<1x128xf32>
    %39 = arith.addf %38, %37 : vector<1x128xf32>
    %40 = arith.divf %38, %39 : vector<1x128xf32>
    %41 = vector.extract_strided_slice %40 {offsets = [0, 0], sizes = [1, 32], strides = [1, 1]} : vector<1x128xf32> to vector<1x32xf32>
    %42 = vector.extract_strided_slice %40 {offsets = [0, 32], sizes = [1, 32], strides = [1, 1]} : vector<1x128xf32> to vector<1x32xf32>
    %43 = vector.extract_strided_slice %40 {offsets = [0, 64], sizes = [1, 32], strides = [1, 1]} : vector<1x128xf32> to vector<1x32xf32>
    %cst_19 = arith.constant 2.000000e+00 : f32
    %44 = vector.broadcast %cst_19 : f32 to vector<1x32xf32>
    %45 = arith.mulf %44, %43 : vector<1x32xf32>
    %cst_20 = arith.constant 1.000000e+00 : f32
    %46 = vector.broadcast %cst_20 : f32 to vector<1x32xf32>
    %47 = arith.subf %45, %46 : vector<1x32xf32>
    %48 = vector.extract_strided_slice %40 {offsets = [0, 96], sizes = [1, 32], strides = [1, 1]} : vector<1x128xf32> to vector<1x32xf32>
    %49 = arith.mulf %42, %29 : vector<1x32xf32>
    %50 = arith.mulf %41, %47 : vector<1x32xf32>
    %51 = arith.addf %49, %50 : vector<1x32xf32>
    %52 = math.tanh %51 : vector<1x32xf32>
    %53 = arith.mulf %48, %52 : vector<1x32xf32>
    %c2_i32 = arith.constant 2 : i32
    %54 = arith.index_cast %c2_i32 : i32 to index
    %c0_21 = arith.constant 0 : index
    %55 = vector.load %arg7[%54, %c0_21] : memref<8x128xf32, #tpu.memory_space<vmem>>, vector<1x128xf32>
    %cst_22 = arith.constant dense<0.000000e+00> : vector<1x128xf32>
    %56 = tpu.matmul %53, %7, %cst_22 {dimension_numbers = #tpu.dot_dimension_numbers<[1], [0], [0], [1], [0, 0, 1, 1], [], []>} : vector<1x32xf32>, vector<32x128xf32>, vector<1x128xf32> -> vector<1x128xf32>
    %57 = arith.addf %55, %56 : vector<1x128xf32>
    %58 = arith.negf %57 : vector<1x128xf32>
    %59 = math.exp %58 : vector<1x128xf32>
    %cst_23 = arith.constant 1.000000e+00 : f32
    %60 = vector.broadcast %cst_23 : f32 to vector<1x128xf32>
    %61 = arith.addf %60, %59 : vector<1x128xf32>
    %62 = arith.divf %60, %61 : vector<1x128xf32>
    %63 = vector.extract_strided_slice %62 {offsets = [0, 0], sizes = [1, 32], strides = [1, 1]} : vector<1x128xf32> to vector<1x32xf32>
    %64 = vector.extract_strided_slice %62 {offsets = [0, 32], sizes = [1, 32], strides = [1, 1]} : vector<1x128xf32> to vector<1x32xf32>
    %65 = vector.extract_strided_slice %62 {offsets = [0, 64], sizes = [1, 32], strides = [1, 1]} : vector<1x128xf32> to vector<1x32xf32>
    %cst_24 = arith.constant 2.000000e+00 : f32
    %66 = vector.broadcast %cst_24 : f32 to vector<1x32xf32>
    %67 = arith.mulf %66, %65 : vector<1x32xf32>
    %cst_25 = arith.constant 1.000000e+00 : f32
    %68 = vector.broadcast %cst_25 : f32 to vector<1x32xf32>
    %69 = arith.subf %67, %68 : vector<1x32xf32>
    %70 = vector.extract_strided_slice %62 {offsets = [0, 96], sizes = [1, 32], strides = [1, 1]} : vector<1x128xf32> to vector<1x32xf32>
    %71 = arith.mulf %64, %51 : vector<1x32xf32>
    %72 = arith.mulf %63, %69 : vector<1x32xf32>
    %73 = arith.addf %71, %72 : vector<1x32xf32>
    %74 = math.tanh %73 : vector<1x32xf32>
    %75 = arith.mulf %70, %74 : vector<1x32xf32>
    %c3_i32 = arith.constant 3 : i32
    %76 = arith.index_cast %c3_i32 : i32 to index
    %c0_26 = arith.constant 0 : index
    %77 = vector.load %arg7[%76, %c0_26] : memref<8x128xf32, #tpu.memory_space<vmem>>, vector<1x128xf32>
    %cst_27 = arith.constant dense<0.000000e+00> : vector<1x128xf32>
    %78 = tpu.matmul %75, %7, %cst_27 {dimension_numbers = #tpu.dot_dimension_numbers<[1], [0], [0], [1], [0, 0, 1, 1], [], []>} : vector<1x32xf32>, vector<32x128xf32>, vector<1x128xf32> -> vector<1x128xf32>
    %79 = arith.addf %77, %78 : vector<1x128xf32>
    %80 = arith.negf %79 : vector<1x128xf32>
    %81 = math.exp %80 : vector<1x128xf32>
    %cst_28 = arith.constant 1.000000e+00 : f32
    %82 = vector.broadcast %cst_28 : f32 to vector<1x128xf32>
    %83 = arith.addf %82, %81 : vector<1x128xf32>
    %84 = arith.divf %82, %83 : vector<1x128xf32>
    %85 = vector.extract_strided_slice %84 {offsets = [0, 0], sizes = [1, 32], strides = [1, 1]} : vector<1x128xf32> to vector<1x32xf32>
    %86 = vector.extract_strided_slice %84 {offsets = [0, 32], sizes = [1, 32], strides = [1, 1]} : vector<1x128xf32> to vector<1x32xf32>
    %87 = vector.extract_strided_slice %84 {offsets = [0, 64], sizes = [1, 32], strides = [1, 1]} : vector<1x128xf32> to vector<1x32xf32>
    %cst_29 = arith.constant 2.000000e+00 : f32
    %88 = vector.broadcast %cst_29 : f32 to vector<1x32xf32>
    %89 = arith.mulf %88, %87 : vector<1x32xf32>
    %cst_30 = arith.constant 1.000000e+00 : f32
    %90 = vector.broadcast %cst_30 : f32 to vector<1x32xf32>
    %91 = arith.subf %89, %90 : vector<1x32xf32>
    %92 = vector.extract_strided_slice %84 {offsets = [0, 96], sizes = [1, 32], strides = [1, 1]} : vector<1x128xf32> to vector<1x32xf32>
    %93 = arith.mulf %86, %73 : vector<1x32xf32>
    %94 = arith.mulf %85, %91 : vector<1x32xf32>
    %95 = arith.addf %93, %94 : vector<1x32xf32>
    %96 = math.tanh %95 : vector<1x32xf32>
    %97 = arith.mulf %92, %96 : vector<1x32xf32>
    %c4_i32 = arith.constant 4 : i32
    %98 = arith.index_cast %c4_i32 : i32 to index
    %c0_31 = arith.constant 0 : index
    %99 = vector.load %arg7[%98, %c0_31] : memref<8x128xf32, #tpu.memory_space<vmem>>, vector<1x128xf32>
    %cst_32 = arith.constant dense<0.000000e+00> : vector<1x128xf32>
    %100 = tpu.matmul %97, %7, %cst_32 {dimension_numbers = #tpu.dot_dimension_numbers<[1], [0], [0], [1], [0, 0, 1, 1], [], []>} : vector<1x32xf32>, vector<32x128xf32>, vector<1x128xf32> -> vector<1x128xf32>
    %101 = arith.addf %99, %100 : vector<1x128xf32>
    %102 = arith.negf %101 : vector<1x128xf32>
    %103 = math.exp %102 : vector<1x128xf32>
    %cst_33 = arith.constant 1.000000e+00 : f32
    %104 = vector.broadcast %cst_33 : f32 to vector<1x128xf32>
    %105 = arith.addf %104, %103 : vector<1x128xf32>
    %106 = arith.divf %104, %105 : vector<1x128xf32>
    %107 = vector.extract_strided_slice %106 {offsets = [0, 0], sizes = [1, 32], strides = [1, 1]} : vector<1x128xf32> to vector<1x32xf32>
    %108 = vector.extract_strided_slice %106 {offsets = [0, 32], sizes = [1, 32], strides = [1, 1]} : vector<1x128xf32> to vector<1x32xf32>
    %109 = vector.extract_strided_slice %106 {offsets = [0, 64], sizes = [1, 32], strides = [1, 1]} : vector<1x128xf32> to vector<1x32xf32>
    %cst_34 = arith.constant 2.000000e+00 : f32
    %110 = vector.broadcast %cst_34 : f32 to vector<1x32xf32>
    %111 = arith.mulf %110, %109 : vector<1x32xf32>
    %cst_35 = arith.constant 1.000000e+00 : f32
    %112 = vector.broadcast %cst_35 : f32 to vector<1x32xf32>
    %113 = arith.subf %111, %112 : vector<1x32xf32>
    %114 = vector.extract_strided_slice %106 {offsets = [0, 96], sizes = [1, 32], strides = [1, 1]} : vector<1x128xf32> to vector<1x32xf32>
    %115 = arith.mulf %108, %95 : vector<1x32xf32>
    %116 = arith.mulf %107, %113 : vector<1x32xf32>
    %117 = arith.addf %115, %116 : vector<1x32xf32>
    %118 = math.tanh %117 : vector<1x32xf32>
    %119 = arith.mulf %114, %118 : vector<1x32xf32>
    %c5_i32 = arith.constant 5 : i32
    %120 = arith.index_cast %c5_i32 : i32 to index
    %c0_36 = arith.constant 0 : index
    %121 = vector.load %arg7[%120, %c0_36] : memref<8x128xf32, #tpu.memory_space<vmem>>, vector<1x128xf32>
    %cst_37 = arith.constant dense<0.000000e+00> : vector<1x128xf32>
    %122 = tpu.matmul %119, %7, %cst_37 {dimension_numbers = #tpu.dot_dimension_numbers<[1], [0], [0], [1], [0, 0, 1, 1], [], []>} : vector<1x32xf32>, vector<32x128xf32>, vector<1x128xf32> -> vector<1x128xf32>
    %123 = arith.addf %121, %122 : vector<1x128xf32>
    %124 = arith.negf %123 : vector<1x128xf32>
    %125 = math.exp %124 : vector<1x128xf32>
    %cst_38 = arith.constant 1.000000e+00 : f32
    %126 = vector.broadcast %cst_38 : f32 to vector<1x128xf32>
    %127 = arith.addf %126, %125 : vector<1x128xf32>
    %128 = arith.divf %126, %127 : vector<1x128xf32>
    %129 = vector.extract_strided_slice %128 {offsets = [0, 0], sizes = [1, 32], strides = [1, 1]} : vector<1x128xf32> to vector<1x32xf32>
    %130 = vector.extract_strided_slice %128 {offsets = [0, 32], sizes = [1, 32], strides = [1, 1]} : vector<1x128xf32> to vector<1x32xf32>
    %131 = vector.extract_strided_slice %128 {offsets = [0, 64], sizes = [1, 32], strides = [1, 1]} : vector<1x128xf32> to vector<1x32xf32>
    %cst_39 = arith.constant 2.000000e+00 : f32
    %132 = vector.broadcast %cst_39 : f32 to vector<1x32xf32>
    %133 = arith.mulf %132, %131 : vector<1x32xf32>
    %cst_40 = arith.constant 1.000000e+00 : f32
    %134 = vector.broadcast %cst_40 : f32 to vector<1x32xf32>
    %135 = arith.subf %133, %134 : vector<1x32xf32>
    %136 = vector.extract_strided_slice %128 {offsets = [0, 96], sizes = [1, 32], strides = [1, 1]} : vector<1x128xf32> to vector<1x32xf32>
    %137 = arith.mulf %130, %117 : vector<1x32xf32>
    %138 = arith.mulf %129, %135 : vector<1x32xf32>
    %139 = arith.addf %137, %138 : vector<1x32xf32>
    %140 = math.tanh %139 : vector<1x32xf32>
    %141 = arith.mulf %136, %140 : vector<1x32xf32>
    %c6_i32 = arith.constant 6 : i32
    %142 = arith.index_cast %c6_i32 : i32 to index
    %c0_41 = arith.constant 0 : index
    %143 = vector.load %arg7[%142, %c0_41] : memref<8x128xf32, #tpu.memory_space<vmem>>, vector<1x128xf32>
    %cst_42 = arith.constant dense<0.000000e+00> : vector<1x128xf32>
    %144 = tpu.matmul %141, %7, %cst_42 {dimension_numbers = #tpu.dot_dimension_numbers<[1], [0], [0], [1], [0, 0, 1, 1], [], []>} : vector<1x32xf32>, vector<32x128xf32>, vector<1x128xf32> -> vector<1x128xf32>
    %145 = arith.addf %143, %144 : vector<1x128xf32>
    %146 = arith.negf %145 : vector<1x128xf32>
    %147 = math.exp %146 : vector<1x128xf32>
    %cst_43 = arith.constant 1.000000e+00 : f32
    %148 = vector.broadcast %cst_43 : f32 to vector<1x128xf32>
    %149 = arith.addf %148, %147 : vector<1x128xf32>
    %150 = arith.divf %148, %149 : vector<1x128xf32>
    %151 = vector.extract_strided_slice %150 {offsets = [0, 0], sizes = [1, 32], strides = [1, 1]} : vector<1x128xf32> to vector<1x32xf32>
    %152 = vector.extract_strided_slice %150 {offsets = [0, 32], sizes = [1, 32], strides = [1, 1]} : vector<1x128xf32> to vector<1x32xf32>
    %153 = vector.extract_strided_slice %150 {offsets = [0, 64], sizes = [1, 32], strides = [1, 1]} : vector<1x128xf32> to vector<1x32xf32>
    %cst_44 = arith.constant 2.000000e+00 : f32
    %154 = vector.broadcast %cst_44 : f32 to vector<1x32xf32>
    %155 = arith.mulf %154, %153 : vector<1x32xf32>
    %cst_45 = arith.constant 1.000000e+00 : f32
    %156 = vector.broadcast %cst_45 : f32 to vector<1x32xf32>
    %157 = arith.subf %155, %156 : vector<1x32xf32>
    %158 = vector.extract_strided_slice %150 {offsets = [0, 96], sizes = [1, 32], strides = [1, 1]} : vector<1x128xf32> to vector<1x32xf32>
    %159 = arith.mulf %152, %139 : vector<1x32xf32>
    %160 = arith.mulf %151, %157 : vector<1x32xf32>
    %161 = arith.addf %159, %160 : vector<1x32xf32>
    %162 = math.tanh %161 : vector<1x32xf32>
    %163 = arith.mulf %158, %162 : vector<1x32xf32>
    %c7_i32 = arith.constant 7 : i32
    %164 = arith.index_cast %c7_i32 : i32 to index
    %c0_46 = arith.constant 0 : index
    %165 = vector.load %arg7[%164, %c0_46] : memref<8x128xf32, #tpu.memory_space<vmem>>, vector<1x128xf32>
    %cst_47 = arith.constant dense<0.000000e+00> : vector<1x128xf32>
    %166 = tpu.matmul %163, %7, %cst_47 {dimension_numbers = #tpu.dot_dimension_numbers<[1], [0], [0], [1], [0, 0, 1, 1], [], []>} : vector<1x32xf32>, vector<32x128xf32>, vector<1x128xf32> -> vector<1x128xf32>
    %167 = arith.addf %165, %166 : vector<1x128xf32>
    %168 = arith.negf %167 : vector<1x128xf32>
    %169 = math.exp %168 : vector<1x128xf32>
    %cst_48 = arith.constant 1.000000e+00 : f32
    %170 = vector.broadcast %cst_48 : f32 to vector<1x128xf32>
    %171 = arith.addf %170, %169 : vector<1x128xf32>
    %172 = arith.divf %170, %171 : vector<1x128xf32>
    %173 = vector.extract_strided_slice %172 {offsets = [0, 0], sizes = [1, 32], strides = [1, 1]} : vector<1x128xf32> to vector<1x32xf32>
    %174 = vector.extract_strided_slice %172 {offsets = [0, 32], sizes = [1, 32], strides = [1, 1]} : vector<1x128xf32> to vector<1x32xf32>
    %175 = vector.extract_strided_slice %172 {offsets = [0, 64], sizes = [1, 32], strides = [1, 1]} : vector<1x128xf32> to vector<1x32xf32>
    %cst_49 = arith.constant 2.000000e+00 : f32
    %176 = vector.broadcast %cst_49 : f32 to vector<1x32xf32>
    %177 = arith.mulf %176, %175 : vector<1x32xf32>
    %cst_50 = arith.constant 1.000000e+00 : f32
    %178 = vector.broadcast %cst_50 : f32 to vector<1x32xf32>
    %179 = arith.subf %177, %178 : vector<1x32xf32>
    %180 = vector.extract_strided_slice %172 {offsets = [0, 96], sizes = [1, 32], strides = [1, 1]} : vector<1x128xf32> to vector<1x32xf32>
    %181 = arith.mulf %174, %161 : vector<1x32xf32>
    %182 = arith.mulf %173, %179 : vector<1x32xf32>
    %183 = arith.addf %181, %182 : vector<1x32xf32>
    %184 = math.tanh %183 : vector<1x32xf32>
    %185 = arith.mulf %180, %184 : vector<1x32xf32>
    %c8_i32 = arith.constant 8 : i32
    %c0_51 = arith.constant 0 : index
    %c0_52 = arith.constant 0 : index
    %186 = vector.load %arg4[%c0_51, %c0_52] : memref<1x32xf32, #tpu.memory_space<vmem>>, vector<1x32xf32>
    %187 = arith.mulf %185, %186 : vector<1x32xf32>
    %cst_53 = arith.constant dense<0.000000e+00> : vector<1xf32>
    %188 = vector.multi_reduction <add>, %187, %cst_53 [1] : vector<1x32xf32> to vector<1xf32>
    %189 = vector.shape_cast %188 : vector<1xf32> to vector<1x1xf32>
    %c0_54 = arith.constant 0 : index
    %c0_55 = arith.constant 0 : index
    %190 = vector.load %arg5[%c0_54, %c0_55] : memref<1x1xf32, #tpu.memory_space<vmem>>, vector<1x1xf32>
    %191 = arith.addf %189, %190 : vector<1x1xf32>
    %c0_56 = arith.constant 0 : index
    %c0_57 = arith.constant 0 : index
    %192 = vector.load %arg6[%c0_56, %c0_57] : memref<1x1xf32, #tpu.memory_space<vmem>>, vector<1x1xf32>
    tpu.vector_store %arg6[%c0_56, %c0_57], %191 {strides = array<i32>} : memref<1x1xf32, #tpu.memory_space<vmem>>, vector<1x1xf32>,
    return
  }
}

</mosaic_0001>

<llo_original>
// kernel: tpu_custom_call.1
$region0: #{tpu_custom_call.1}
  #allocation0 [shape = 'u32[]', space=smem, size = 0x4, offset = 0x4, fixed_abs, tag = 'smem constant byte address 0x4 - core index']
  #allocation1 [shape = 'u32[144,128]{1,0:T(1,128)}', space=vmem, size = 0x12000, scoped, tag = 'internal scratch']
  #allocation2 [shape = 'f32[8,128]{1,0:T(8,128)}', space=vmem, size = 0x1000, scoped, tag = 'scratch operand']
  #allocation3 [shape = 'f32[1,1]{1,0:T(1,128)S(1)}', space=vmem, size = 0x200, scoped, tag = 'scoped memory for tpu_custom_call.1']
  %s0 = inlined_call_operand.vmem [shape: f32[8,1], index: 0, kind: input, shape index: {}]
  %s1 = inlined_call_operand.vmem [shape: f32[1,128], index: 1, kind: input, shape index: {}]
  %s2 = inlined_call_operand.hbm [shape: f32[32,128], index: 2, kind: input, shape index: {}]
  %s3 = inlined_call_operand.vmem [shape: f32[1,128], index: 3, kind: input, shape index: {}]
  %s4 = inlined_call_operand.vmem [shape: f32[1,32], index: 4, kind: input, shape index: {}]
  %s5 = inlined_call_operand.<no memory space> [shape: f32[1,1], index: 5, kind: input, shape index: {}]
  %s6 = inlined_call_operand.hbm [shape: f32[1,1], index: 6, kind: output, shape index: {}]
  %s7 = sld [smem:[#allocation0]]
  $region38: #{tpu_custom_call.1} parent=0
    _
  %s9 = ssub.s32 1, %s7
  %s10 = scalar_select 0, %s9, %s7
  %v11 = vstv %s5
  %12 = vst [vmem:[#allocation3] sm:$0x1] %v11
  $region1: #{tpu_custom_call.1} parent=0
    #allocation4 [shape = 'u8[16384]{0}', space=vmem, size = 0x4000, scoped, tag = 'input window, operand 2, single buffered']
    #allocation5 [shape = 's32[1]{0}', space=sflag, size = 0x4, scoped, tag = 'scoped memory for tpu_custom_call.1']
    #allocation6 [shape = 's32[1]{0}', space=sflag, size = 0x4, scoped, tag = 'scoped memory for tpu_custom_call.1']
    #allocation7 [shape = 'u8[512]{0}', space=vmem, size = 0x400, scoped, tag = 'output window, operand 0, single buffered']
    %13 = vsyncpa [#allocation5], 0
    %14 = vsyncpa [#allocation6], 0
    // Predicated region
    $region2: #{tpu_custom_call.1} parent=1 // pred_check
      _
    $region3: #{tpu_custom_call.1} parent=1 // pred_check_branch
      %16 = sbr.rel (0) target = $region5
    $region4: #{tpu_custom_call.1} parent=1 // pred_region
      _
    $region5: #{tpu_custom_call.1} parent=1 // pred_fallthru
      _
    // Predicated region
    $region6: #{tpu_custom_call.1} parent=1 // pred_check
      _
    $region7: #{tpu_custom_call.1} parent=1 // pred_check_branch
      %18 = sbr.rel (0) target = $region9
    $region8: #{tpu_custom_call.1} parent=1 // pred_region
      _
    $region9: #{tpu_custom_call.1} parent=1 // pred_fallthru
      _
    // Predicated region
    $region10: #{tpu_custom_call.1} parent=1 // pred_check
      _
    $region11: #{tpu_custom_call.1} parent=1 // pred_check_branch
      %20 = sbr.rel (0) target = $region13
    $region12: #{tpu_custom_call.1} parent=1 // pred_region
      %s22 = ssub.s32 512, 512
      %23 = vsyncadd [#allocation5], %s22
      %s24 = sshll.u32 [#allocation4], 4
      %s25 = int_to_ptr.vmem [resolvable:$true] %s24
      %30 = dma.hbm_to_vmem [thread:$0]  %s2, 512, %s25, [#allocation5], 128, 128, 8
    $region13: #{tpu_custom_call.1} parent=1 // pred_fallthru
      _
    // Predicated region
    $region14: #{tpu_custom_call.1} parent=1 // pred_check
      _
    $region15: #{tpu_custom_call.1} parent=1 // pred_check_branch
      %32 = sbr.rel (0) target = $region17
    $region16: #{tpu_custom_call.1} parent=1 // pred_region
      _
    $region17: #{tpu_custom_call.1} parent=1 // pred_fallthru
      _
    // Predicated region
    $region18: #{tpu_custom_call.1} parent=1 // pred_check
      _
    $region19: #{tpu_custom_call.1} parent=1 // pred_check_branch
      %34 = sbr.rel (0) target = $region21
    $region20: #{tpu_custom_call.1} parent=1 // pred_region
      _
    $region21: #{tpu_custom_call.1} parent=1 // pred_fallthru
      _
    // Predicated region
    $region22: #{tpu_custom_call.1} parent=1 // pred_check
      _
    $region23: #{tpu_custom_call.1} parent=1 // pred_check_branch
      %36 = sbr.rel (0) target = $region25
    $region24: #{tpu_custom_call.1} parent=1 // pred_region
      _
    $region25: #{tpu_custom_call.1} parent=1 // pred_fallthru
      _
    // Predicated region
    $region26: #{tpu_custom_call.1} parent=1 // pred_check
      _
    $region27: #{tpu_custom_call.1} parent=1 // pred_check_branch
      %38 = sbr.rel (0) target = $region29
    $region28: #{tpu_custom_call.1} parent=1 // pred_region
      %39 = dma.done [#allocation5], 512
    $region29: #{tpu_custom_call.1} parent=1 // pred_fallthru
      _
    %v40 = vld [vmem:[%s0] sm:$0xff]
    %v41 = vld [vmem:[%s1] sm:$0x1]
    %v42 = vld [vmem:[%s3] sm:$0x1]
    %v44 = vlaneseq
    %v45 = vshrl.u32 %v44, 7
    %v46 = vsub.s32 0, %v45
    %v47 = vrot.slane %v42, %v46
    %vm49 = vcmask 7168
    %v51 = vsel %vm49, %v40, 0
    %vm53 = vcmask 1040384
    %v55 = vsel %vm53, %v41, 0
    %57 = vmatprep.subr.mxu0 0.0
    %58 = vmatpush1.msra.mxu0 %v55
    %59 = vmatprep.subr.mxu0 0.0
    %60 = vmatpush1.msra.mxu0 0.0
    %61 = vmatprep.subr.mxu0 0.0
    %62 = vmatpush1.msra.mxu0 0.0
    %63 = vmatprep.subr.mxu0 0.0
    %64 = vmatpush1.msra.mxu0 0.0
    %65 = vmatprep.subr.mxu0 0.0
    %66 = vmatpush1.msra.mxu0 0.0
    %67 = vmatprep.subr.mxu0 0.0
    %68 = vmatpush1.msra.mxu0 0.0
    %69 = vmatprep.subr.mxu0 0.0
    %70 = vmatpush1.msra.mxu0 0.0
    %71 = vmatprep.subr.mxu0 0.0
    %72 = vmatpush1.msra.mxu0 0.0
    %73 = vmatprep.subr.mxu0 0.0
    %74 = vmatpush1.msra.mxu0 0.0
    %75 = vmatprep.subr.mxu0 0.0
    %76 = vmatpush1.msra.mxu0 0.0
    %77 = vmatprep.subr.mxu0 0.0
    %78 = vmatpush1.msra.mxu0 0.0
    %79 = vmatprep.subr.mxu0 0.0
    %80 = vmatpush1.msra.mxu0 0.0
    %81 = vmatprep.subr.mxu0 0.0
    %82 = vmatpush1.msra.mxu0 0.0
    %83 = vmatprep.subr.mxu0 0.0
    %84 = vmatpush1.msra.mxu0 0.0
    %85 = vmatprep.subr.mxu0 0.0
    %86 = vmatpush1.msra.mxu0 0.0
    %87 = vmatprep.subr.mxu0 0.0
    %88 = vmatpush1.msra.mxu0 0.0
    %89 = vmatprep.subr.mxu0 0.0
    %90 = vmatpush1.msra.mxu0 0.0
    %91 = vmatprep.subr.mxu0 0.0
    %92 = vmatpush1.msra.mxu0 0.0
    %93 = vmatprep.subr.mxu0 0.0
    %94 = vmatpush1.msra.mxu0 0.0
    %95 = vmatprep.subr.mxu0 0.0
    %96 = vmatpush1.msra.mxu0 0.0
    %97 = vmatprep.subr.mxu0 0.0
    %98 = vmatpush1.msra.mxu0 0.0
    %99 = vmatprep.subr.mxu0 0.0
    %100 = vmatpush1.msra.mxu0 0.0
    %101 = vmatprep.subr.mxu0 0.0
    %102 = vmatpush1.msra.mxu0 0.0
    %103 = vmatprep.subr.mxu0 0.0
    %104 = vmatpush1.msra.mxu0 0.0
    %105 = vmatprep.subr.mxu0 0.0
    %106 = vmatpush1.msra.mxu0 0.0
    %107 = vmatprep.subr.mxu0 0.0
    %108 = vmatpush1.msra.mxu0 0.0
    %109 = vmatprep.subr.mxu0 0.0
    %110 = vmatpush1.msra.mxu0 0.0
    %111 = vmatprep.subr.mxu0 0.0
    %112 = vmatpush1.msra.mxu0 0.0
    %113 = vmatprep.subr.mxu0 0.0
    %114 = vmatpush1.msra.mxu0 0.0
    %115 = vmatprep.subr.mxu0 0.0
    %116 = vmatpush1.msra.mxu0 0.0
    %117 = vmatprep.subr.mxu0 0.0
    %118 = vmatpush1.msra.mxu0 0.0
    %119 = vmatprep.subr.mxu0 0.0
    %120 = vmatpush1.msra.mxu0 0.0
    %121 = vmatprep.mubr.f32.mxu0 0.0
    %122 = vmatmul.mubr.f32.gmra.mrb[0].mxu0 %v51
    %v123 = vpop.f32.mrb[0].mxu0
    %v124 = vadd.f32 %v47, %v123
    %v125 = vpop.f32.mrb[0].mxu0
    %126 = vdwg.mxu0
    %127 = vst [vmem:[#allocation2] sm:$0xff] %v124
    %v128 = vld [vmem:[#allocation4] sm:$0xff]
    %v129 = vld [vmem:[#allocation4 + $0x8] sm:$0xff]
    %v130 = vld [vmem:[#allocation4 + $0x10] sm:$0xff]
    %v131 = vld [vmem:[#allocation4 + $0x18] sm:$0xff]
    %v132 = vld [vmem:[#allocation2] sm:$0x1]
    %vm133 = vcmask 261120
    %v135 = vsel %vm133, 0.0, 0
    %137 = vmatprep.subr.mxu0 0.0
    %138 = vmatpush1.msra.mxu0 %v128
    %139 = vmatprep.subr.mxu0 0.0
    %140 = vmatpush1.msra.mxu0 %v129
    %141 = vmatprep.subr.mxu0 0.0
    %142 = vmatpush1.msra.mxu0 %v130
    %143 = vmatprep.subr.mxu0 0.0
    %144 = vmatpush1.msra.mxu0 %v131
    %145 = vmatprep.subr.mxu0 0.0
    %146 = vmatpush1.msra.mxu0 0.0
    %147 = vmatprep.subr.mxu0 0.0
    %148 = vmatpush1.msra.mxu0 0.0
    %149 = vmatprep.subr.mxu0 0.0
    %150 = vmatpush1.msra.mxu0 0.0
    %151 = vmatprep.subr.mxu0 0.0
    %152 = vmatpush1.msra.mxu0 0.0
    %153 = vmatprep.subr.mxu0 0.0
    %154 = vmatpush1.msra.mxu0 0.0
    %155 = vmatprep.subr.mxu0 0.0
    %156 = vmatpush1.msra.mxu0 0.0
    %157 = vmatprep.subr.mxu0 0.0
    %158 = vmatpush1.msra.mxu0 0.0
    %159 = vmatprep.subr.mxu0 0.0
    %160 = vmatpush1.msra.mxu0 0.0
    %161 = vmatprep.subr.mxu0 0.0
    %162 = vmatpush1.msra.mxu0 0.0
    %163 = vmatprep.subr.mxu0 0.0
    %164 = vmatpush1.msra.mxu0 0.0
    %165 = vmatprep.subr.mxu0 0.0
    %166 = vmatpush1.msra.mxu0 0.0
    %167 = vmatprep.subr.mxu0 0.0
    %168 = vmatpush1.msra.mxu0 0.0
    %169 = vmatprep.subr.mxu0 0.0
    %170 = vmatpush1.msra.mxu0 0.0
    %171 = vmatprep.subr.mxu0 0.0
    %172 = vmatpush1.msra.mxu0 0.0
    %173 = vmatprep.subr.mxu0 0.0
    %174 = vmatpush1.msra.mxu0 0.0
    %175 = vmatprep.subr.mxu0 0.0
    %176 = vmatpush1.msra.mxu0 0.0
    %177 = vmatprep.subr.mxu0 0.0
    %178 = vmatpush1.msra.mxu0 0.0
    %179 = vmatprep.subr.mxu0 0.0
    %180 = vmatpush1.msra.mxu0 0.0
    %181 = vmatprep.subr.mxu0 0.0
    %182 = vmatpush1.msra.mxu0 0.0
    %183 = vmatprep.subr.mxu0 0.0
    %184 = vmatpush1.msra.mxu0 0.0
    %185 = vmatprep.subr.mxu0 0.0
    %186 = vmatpush1.msra.mxu0 0.0
    %187 = vmatprep.subr.mxu0 0.0
    %188 = vmatpush1.msra.mxu0 0.0
    %189 = vmatprep.subr.mxu0 0.0
    %190 = vmatpush1.msra.mxu0 0.0
    %191 = vmatprep.subr.mxu0 0.0
    %192 = vmatpush1.msra.mxu0 0.0
    %193 = vmatprep.subr.mxu0 0.0
    %194 = vmatpush1.msra.mxu0 0.0
    %195 = vmatprep.subr.mxu0 0.0
    %196 = vmatpush1.msra.mxu0 0.0
    %197 = vmatprep.subr.mxu0 0.0
    %198 = vmatpush1.msra.mxu0 0.0
    %199 = vmatprep.subr.mxu0 0.0
    %200 = vmatpush1.msra.mxu0 0.0
    %201 = vmatprep.mubr.f32.mxu0 0.0
    %202 = vmatmul.mubr.f32.gmra.mrb[0].mxu0 %v135
    %v203 = vpop.f32.mrb[0].mxu0
    %v204 = vadd.f32 0.0, %v203
    %v205 = vpop.f32.mrb[0].mxu0
    %206 = vdwg.mxu0
    %v207 = vadd.f32 %v132, %v204
    %v208 = vxor.u32 %v207, 2147483648
    %v209 = vmul.f32 %v208, 1.442695
    %v210 = vpow.pop %v209
    %v211 = vadd.f32 %v210, 1.0
    %v212 = vrcp.pop %v211
    %v213 = vmul.f32 1.0, %v212
    %v214 = vmul.f32 %v213, 2.0
    %v215 = vsub.f32 %v214, 1.0
    %v216 = vmul.f32 %v213, 0.0
    %218 = vrot.lane.b32.xlu0 %v215, 64
    %v219 = vpop.permute.xlu0 %218
    %v221 = vmul.f32 %v213, %v219
    %223 = vrot.lane.b32.xlu0 %v221, 32
    %v224 = vpop.permute.xlu0 %223
    %v226 = vadd.f32 %v216, %v224
    %v227 = vtanh.pop %v226
    %229 = vrot.lane.b32.xlu0 %v227, 64
    %v230 = vpop.permute.xlu0 %229
    %v232 = vmul.f32 %v213, %v230
    %v233 = vld [vmem:[#allocation2 + $0x1] sm:$0x1]
    %235 = vrot.lane.b32.xlu0 %v232, 32
    %v236 = vpop.permute.xlu0 %235
    %v237 = vsel %vm133, %v236, 0
    %239 = vmatprep.subr.mxu0 0.0
    %240 = vmatpush1.msra.mxu0 %v128
    %241 = vmatprep.subr.mxu0 0.0
    %242 = vmatpush1.msra.mxu0 %v129
    %243 = vmatprep.subr.mxu0 0.0
    %244 = vmatpush1.msra.mxu0 %v130
    %245 = vmatprep.subr.mxu0 0.0
    %246 = vmatpush1.msra.mxu0 %v131
    %247 = vmatprep.subr.mxu0 0.0
    %248 = vmatpush1.msra.mxu0 0.0
    %249 = vmatprep.subr.mxu0 0.0
    %250 = vmatpush1.msra.mxu0 0.0
    %251 = vmatprep.subr.mxu0 0.0
    %252 = vmatpush1.msra.mxu0 0.0
    %253 = vmatprep.subr.mxu0 0.0
    %254 = vmatpush1.msra.mxu0 0.0
    %255 = vmatprep.subr.mxu0 0.0
    %256 = vmatpush1.msra.mxu0 0.0
    %257 = vmatprep.subr.mxu0 0.0
    %258 = vmatpush1.msra.mxu0 0.0
    %259 = vmatprep.subr.mxu0 0.0
    %260 = vmatpush1.msra.mxu0 0.0
    %261 = vmatprep.subr.mxu0 0.0
    %262 = vmatpush1.msra.mxu0 0.0
    %263 = vmatprep.subr.mxu0 0.0
    %264 = vmatpush1.msra.mxu0 0.0
    %265 = vmatprep.subr.mxu0 0.0
    %266 = vmatpush1.msra.mxu0 0.0
    %267 = vmatprep.subr.mxu0 0.0
    %268 = vmatpush1.msra.mxu0 0.0
    %269 = vmatprep.subr.mxu0 0.0
    %270 = vmatpush1.msra.mxu0 0.0
    %271 = vmatprep.subr.mxu0 0.0
    %272 = vmatpush1.msra.mxu0 0.0
    %273 = vmatprep.subr.mxu0 0.0
    %274 = vmatpush1.msra.mxu0 0.0
    %275 = vmatprep.subr.mxu0 0.0
    %276 = vmatpush1.msra.mxu0 0.0
    %277 = vmatprep.subr.mxu0 0.0
    %278 = vmatpush1.msra.mxu0 0.0
    %279 = vmatprep.subr.mxu0 0.0
    %280 = vmatpush1.msra.mxu0 0.0
    %281 = vmatprep.subr.mxu0 0.0
    %282 = vmatpush1.msra.mxu0 0.0
    %283 = vmatprep.subr.mxu0 0.0
    %284 = vmatpush1.msra.mxu0 0.0
    %285 = vmatprep.subr.mxu0 0.0
    %286 = vmatpush1.msra.mxu0 0.0
    %287 = vmatprep.subr.mxu0 0.0
    %288 = vmatpush1.msra.mxu0 0.0
    %289 = vmatprep.subr.mxu0 0.0
    %290 = vmatpush1.msra.mxu0 0.0
    %291 = vmatprep.subr.mxu0 0.0
    %292 = vmatpush1.msra.mxu0 0.0
    %293 = vmatprep.subr.mxu0 0.0
    %294 = vmatpush1.msra.mxu0 0.0
    %295 = vmatprep.subr.mxu0 0.0
    %296 = vmatpush1.msra.mxu0 0.0
    %297 = vmatprep.subr.mxu0 0.0
    %298 = vmatpush1.msra.mxu0 0.0
    %299 = vmatprep.subr.mxu0 0.0
    %300 = vmatpush1.msra.mxu0 0.0
    %301 = vmatprep.subr.mxu0 0.0
    %302 = vmatpush1.msra.mxu0 0.0
    %303 = vmatprep.mubr.f32.mxu0 0.0
    %304 = vmatmul.mubr.f32.gmra.mrb[0].mxu0 %v237
    %v305 = vpop.f32.mrb[0].mxu0
    %v306 = vadd.f32 0.0, %v305
    %v307 = vpop.f32.mrb[0].mxu0
    %308 = vdwg.mxu0
    %v309 = vadd.f32 %v233, %v306
    %v310 = vxor.u32 %v309, 2147483648
    %v311 = vmul.f32 %v310, 1.442695
    %v312 = vpow.pop %v311
    %v313 = vadd.f32 %v312, 1.0
    %v314 = vrcp.pop %v313
    %v315 = vmul.f32 1.0, %v314
    %v316 = vmul.f32 %v315, 2.0
    %v317 = vsub.f32 %v316, 1.0
    %v318 = vmul.f32 %v315, %v226
    %320 = vrot.lane.b32.xlu0 %v317, 64
    %v321 = vpop.permute.xlu0 %320
    %v323 = vmul.f32 %v315, %v321
    %325 = vrot.lane.b32.xlu0 %v323, 32
    %v326 = vpop.permute.xlu0 %325
    %v328 = vadd.f32 %v318, %v326
    %v329 = vtanh.pop %v328
    %331 = vrot.lane.b32.xlu0 %v329, 64
    %v332 = vpop.permute.xlu0 %331
    %v334 = vmul.f32 %v315, %v332
    %v335 = vld [vmem:[#allocation2 + $0x2] sm:$0x1]
    %337 = vrot.lane.b32.xlu0 %v334, 32
    %v338 = vpop.permute.xlu0 %337
    %v339 = vsel %vm133, %v338, 0
    %341 = vmatprep.subr.mxu0 0.0
    %342 = vmatpush1.msra.mxu0 %v128
    %343 = vmatprep.subr.mxu0 0.0
    %344 = vmatpush1.msra.mxu0 %v129
    %345 = vmatprep.subr.mxu0 0.0
    %346 = vmatpush1.msra.mxu0 %v130
    %347 = vmatprep.subr.mxu0 0.0
    %348 = vmatpush1.msra.mxu0 %v131
    %349 = vmatprep.subr.mxu0 0.0
    %350 = vmatpush1.msra.mxu0 0.0
    %351 = vmatprep.subr.mxu0 0.0
    %352 = vmatpush1.msra.mxu0 0.0
    %353 = vmatprep.subr.mxu0 0.0
    %354 = vmatpush1.msra.mxu0 0.0
    %355 = vmatprep.subr.mxu0 0.0
    %356 = vmatpush1.msra.mxu0 0.0
    %357 = vmatprep.subr.mxu0 0.0
    %358 = vmatpush1.msra.mxu0 0.0
    %359 = vmatprep.subr.mxu0 0.0
    %360 = vmatpush1.msra.mxu0 0.0
    %361 = vmatprep.subr.mxu0 0.0
    %362 = vmatpush1.msra.mxu0 0.0
    %363 = vmatprep.subr.mxu0 0.0
    %364 = vmatpush1.msra.mxu0 0.0
    %365 = vmatprep.subr.mxu0 0.0
    %366 = vmatpush1.msra.mxu0 0.0
    %367 = vmatprep.subr.mxu0 0.0
    %368 = vmatpush1.msra.mxu0 0.0
    %369 = vmatprep.subr.mxu0 0.0
    %370 = vmatpush1.msra.mxu0 0.0
    %371 = vmatprep.subr.mxu0 0.0
    %372 = vmatpush1.msra.mxu0 0.0
    %373 = vmatprep.subr.mxu0 0.0
    %374 = vmatpush1.msra.mxu0 0.0
    %375 = vmatprep.subr.mxu0 0.0
    %376 = vmatpush1.msra.mxu0 0.0
    %377 = vmatprep.subr.mxu0 0.0
    %378 = vmatpush1.msra.mxu0 0.0
    %379 = vmatprep.subr.mxu0 0.0
    %380 = vmatpush1.msra.mxu0 0.0
    %381 = vmatprep.subr.mxu0 0.0
    %382 = vmatpush1.msra.mxu0 0.0
    %383 = vmatprep.subr.mxu0 0.0
    %384 = vmatpush1.msra.mxu0 0.0
    %385 = vmatprep.subr.mxu0 0.0
    %386 = vmatpush1.msra.mxu0 0.0
    %387 = vmatprep.subr.mxu0 0.0
    %388 = vmatpush1.msra.mxu0 0.0
    %389 = vmatprep.subr.mxu0 0.0
    %390 = vmatpush1.msra.mxu0 0.0
    %391 = vmatprep.subr.mxu0 0.0
    %392 = vmatpush1.msra.mxu0 0.0
    %393 = vmatprep.subr.mxu0 0.0
    %394 = vmatpush1.msra.mxu0 0.0
    %395 = vmatprep.subr.mxu0 0.0
    %396 = vmatpush1.msra.mxu0 0.0
    %397 = vmatprep.subr.mxu0 0.0
    %398 = vmatpush1.msra.mxu0 0.0
    %399 = vmatprep.subr.mxu0 0.0
    %400 = vmatpush1.msra.mxu0 0.0
    %401 = vmatprep.subr.mxu0 0.0
    %402 = vmatpush1.msra.mxu0 0.0
    %403 = vmatprep.subr.mxu0 0.0
    %404 = vmatpush1.msra.mxu0 0.0
    %405 = vmatprep.mubr.f32.mxu0 0.0
    %406 = vmatmul.mubr.f32.gmra.mrb[0].mxu0 %v339
    %v407 = vpop.f32.mrb[0].mxu0
    %v408 = vadd.f32 0.0, %v407
    %v409 = vpop.f32.mrb[0].mxu0
    %410 = vdwg.mxu0
    %v411 = vadd.f32 %v335, %v408
    %v412 = vxor.u32 %v411, 2147483648
    %v413 = vmul.f32 %v412, 1.442695
    %v414 = vpow.pop %v413
    %v415 = vadd.f32 %v414, 1.0
    %v416 = vrcp.pop %v415
    %v417 = vmul.f32 1.0, %v416
    %v418 = vmul.f32 %v417, 2.0
    %v419 = vsub.f32 %v418, 1.0
    %v420 = vmul.f32 %v417, %v328
    %422 = vrot.lane.b32.xlu0 %v419, 64
    %v423 = vpop.permute.xlu0 %422
    %v425 = vmul.f32 %v417, %v423
    %427 = vrot.lane.b32.xlu0 %v425, 32
    %v428 = vpop.permute.xlu0 %427
    %v430 = vadd.f32 %v420, %v428
    %v431 = vtanh.pop %v430
    %433 = vrot.lane.b32.xlu0 %v431, 64
    %v434 = vpop.permute.xlu0 %433
    %v436 = vmul.f32 %v417, %v434
    %v437 = vld [vmem:[#allocation2 + $0x3] sm:$0x1]
    %439 = vrot.lane.b32.xlu0 %v436, 32
    %v440 = vpop.permute.xlu0 %439
    %v441 = vsel %vm133, %v440, 0
    %443 = vmatprep.subr.mxu0 0.0
    %444 = vmatpush1.msra.mxu0 %v128
    %445 = vmatprep.subr.mxu0 0.0
    %446 = vmatpush1.msra.mxu0 %v129
    %447 = vmatprep.subr.mxu0 0.0
    %448 = vmatpush1.msra.mxu0 %v130
    %449 = vmatprep.subr.mxu0 0.0
    %450 = vmatpush1.msra.mxu0 %v131
    %451 = vmatprep.subr.mxu0 0.0
    %452 = vmatpush1.msra.mxu0 0.0
    %453 = vmatprep.subr.mxu0 0.0
    %454 = vmatpush1.msra.mxu0 0.0
    %455 = vmatprep.subr.mxu0 0.0
    %456 = vmatpush1.msra.mxu0 0.0
    %457 = vmatprep.subr.mxu0 0.0
    %458 = vmatpush1.msra.mxu0 0.0
    %459 = vmatprep.subr.mxu0 0.0
    %460 = vmatpush1.msra.mxu0 0.0
    %461 = vmatprep.subr.mxu0 0.0
    %462 = vmatpush1.msra.mxu0 0.0
    %463 = vmatprep.subr.mxu0 0.0
    %464 = vmatpush1.msra.mxu0 0.0
    %465 = vmatprep.subr.mxu0 0.0
    %466 = vmatpush1.msra.mxu0 0.0
    %467 = vmatprep.subr.mxu0 0.0
    %468 = vmatpush1.msra.mxu0 0.0
    %469 = vmatprep.subr.mxu0 0.0
    %470 = vmatpush1.msra.mxu0 0.0
    %471 = vmatprep.subr.mxu0 0.0
    %472 = vmatpush1.msra.mxu0 0.0
    %473 = vmatprep.subr.mxu0 0.0
    %474 = vmatpush1.msra.mxu0 0.0
    %475 = vmatprep.subr.mxu0 0.0
    %476 = vmatpush1.msra.mxu0 0.0
    %477 = vmatprep.subr.mxu0 0.0
    %478 = vmatpush1.msra.mxu0 0.0
    %479 = vmatprep.subr.mxu0 0.0
    %480 = vmatpush1.msra.mxu0 0.0
    %481 = vmatprep.subr.mxu0 0.0
    %482 = vmatpush1.msra.mxu0 0.0
    %483 = vmatprep.subr.mxu0 0.0
    %484 = vmatpush1.msra.mxu0 0.0
    %485 = vmatprep.subr.mxu0 0.0
    %486 = vmatpush1.msra.mxu0 0.0
    %487 = vmatprep.subr.mxu0 0.0
    %488 = vmatpush1.msra.mxu0 0.0
    %489 = vmatprep.subr.mxu0 0.0
    %490 = vmatpush1.msra.mxu0 0.0
    %491 = vmatprep.subr.mxu0 0.0
    %492 = vmatpush1.msra.mxu0 0.0
    %493 = vmatprep.subr.mxu0 0.0
    %494 = vmatpush1.msra.mxu0 0.0
    %495 = vmatprep.subr.mxu0 0.0
    %496 = vmatpush1.msra.mxu0 0.0
    %497 = vmatprep.subr.mxu0 0.0
    %498 = vmatpush1.msra.mxu0 0.0
    %499 = vmatprep.subr.mxu0 0.0
    %500 = vmatpush1.msra.mxu0 0.0
    %501 = vmatprep.subr.mxu0 0.0
    %502 = vmatpush1.msra.mxu0 0.0
    %503 = vmatprep.subr.mxu0 0.0
    %504 = vmatpush1.msra.mxu0 0.0
    %505 = vmatprep.subr.mxu0 0.0
    %506 = vmatpush1.msra.mxu0 0.0
    %507 = vmatprep.mubr.f32.mxu0 0.0
    %508 = vmatmul.mubr.f32.gmra.mrb[0].mxu0 %v441
    %v509 = vpop.f32.mrb[0].mxu0
    %v510 = vadd.f32 0.0, %v509
    %v511 = vpop.f32.mrb[0].mxu0
    %512 = vdwg.mxu0
    %v513 = vadd.f32 %v437, %v510
    %v514 = vxor.u32 %v513, 2147483648
    %v515 = vmul.f32 %v514, 1.442695
    %v516 = vpow.pop %v515
    %v517 = vadd.f32 %v516, 1.0
    %v518 = vrcp.pop %v517
    %v519 = vmul.f32 1.0, %v518
    %v520 = vmul.f32 %v519, 2.0
    %v521 = vsub.f32 %v520, 1.0
    %v522 = vmul.f32 %v519, %v430
    %524 = vrot.lane.b32.xlu0 %v521, 64
    %v525 = vpop.permute.xlu0 %524
    %v527 = vmul.f32 %v519, %v525
    %529 = vrot.lane.b32.xlu0 %v527, 32
    %v530 = vpop.permute.xlu0 %529
    %v532 = vadd.f32 %v522, %v530
    %v533 = vtanh.pop %v532
    %535 = vrot.lane.b32.xlu0 %v533, 64
    %v536 = vpop.permute.xlu0 %535
    %v538 = vmul.f32 %v519, %v536
    %v539 = vld [vmem:[#allocation2 + $0x4] sm:$0x1]
    %541 = vrot.lane.b32.xlu0 %v538, 32
    %v542 = vpop.permute.xlu0 %541
    %v543 = vsel %vm133, %v542, 0
    %545 = vmatprep.subr.mxu0 0.0
    %546 = vmatpush1.msra.mxu0 %v128
    %547 = vmatprep.subr.mxu0 0.0
    %548 = vmatpush1.msra.mxu0 %v129
    %549 = vmatprep.subr.mxu0 0.0
    %550 = vmatpush1.msra.mxu0 %v130
    %551 = vmatprep.subr.mxu0 0.0
    %552 = vmatpush1.msra.mxu0 %v131
    %553 = vmatprep.subr.mxu0 0.0
    %554 = vmatpush1.msra.mxu0 0.0
    %555 = vmatprep.subr.mxu0 0.0
    %556 = vmatpush1.msra.mxu0 0.0
    %557 = vmatprep.subr.mxu0 0.0
    %558 = vmatpush1.msra.mxu0 0.0
    %559 = vmatprep.subr.mxu0 0.0
    %560 = vmatpush1.msra.mxu0 0.0
    %561 = vmatprep.subr.mxu0 0.0
    %562 = vmatpush1.msra.mxu0 0.0
    %563 = vmatprep.subr.mxu0 0.0
    %564 = vmatpush1.msra.mxu0 0.0
    %565 = vmatprep.subr.mxu0 0.0
    %566 = vmatpush1.msra.mxu0 0.0
    %567 = vmatprep.subr.mxu0 0.0
    %568 = vmatpush1.msra.mxu0 0.0
    %569 = vmatprep.subr.mxu0 0.0
    %570 = vmatpush1.msra.mxu0 0.0
    %571 = vmatprep.subr.mxu0 0.0
    %572 = vmatpush1.msra.mxu0 0.0
    %573 = vmatprep.subr.mxu0 0.0
    %574 = vmatpush1.msra.mxu0 0.0
    %575 = vmatprep.subr.mxu0 0.0
    %576 = vmatpush1.msra.mxu0 0.0
    %577 = vmatprep.subr.mxu0 0.0
    %578 = vmatpush1.msra.mxu0 0.0
    %579 = vmatprep.subr.mxu0 0.0
    %580 = vmatpush1.msra.mxu0 0.0
    %581 = vmatprep.subr.mxu0 0.0
    %582 = vmatpush1.msra.mxu0 0.0
    %583 = vmatprep.subr.mxu0 0.0
    %584 = vmatpush1.msra.mxu0 0.0
    %585 = vmatprep.subr.mxu0 0.0
    %586 = vmatpush1.msra.mxu0 0.0
    %587 = vmatprep.subr.mxu0 0.0
    %588 = vmatpush1.msra.mxu0 0.0
    %589 = vmatprep.subr.mxu0 0.0
    %590 = vmatpush1.msra.mxu0 0.0
    %591 = vmatprep.subr.mxu0 0.0
    %592 = vmatpush1.msra.mxu0 0.0
    %593 = vmatprep.subr.mxu0 0.0
    %594 = vmatpush1.msra.mxu0 0.0
    %595 = vmatprep.subr.mxu0 0.0
    %596 = vmatpush1.msra.mxu0 0.0
    %597 = vmatprep.subr.mxu0 0.0
    %598 = vmatpush1.msra.mxu0 0.0
    %599 = vmatprep.subr.mxu0 0.0
    %600 = vmatpush1.msra.mxu0 0.0
    %601 = vmatprep.subr.mxu0 0.0
    %602 = vmatpush1.msra.mxu0 0.0
    %603 = vmatprep.subr.mxu0 0.0
    %604 = vmatpush1.msra.mxu0 0.0
    %605 = vmatprep.subr.mxu0 0.0
    %606 = vmatpush1.msra.mxu0 0.0
    %607 = vmatprep.subr.mxu0 0.0
    %608 = vmatpush1.msra.mxu0 0.0
    %609 = vmatprep.mubr.f32.mxu0 0.0
    %610 = vmatmul.mubr.f32.gmra.mrb[0].mxu0 %v543
    %v611 = vpop.f32.mrb[0].mxu0
    %v612 = vadd.f32 0.0, %v611
    %v613 = vpop.f32.mrb[0].mxu0
    %614 = vdwg.mxu0
    %v615 = vadd.f32 %v539, %v612
    %v616 = vxor.u32 %v615, 2147483648
    %v617 = vmul.f32 %v616, 1.442695
    %v618 = vpow.pop %v617
    %v619 = vadd.f32 %v618, 1.0
    %v620 = vrcp.pop %v619
    %v621 = vmul.f32 1.0, %v620
    %v622 = vmul.f32 %v621, 2.0
    %v623 = vsub.f32 %v622, 1.0
    %v624 = vmul.f32 %v621, %v532
    %626 = vrot.lane.b32.xlu0 %v623, 64
    %v627 = vpop.permute.xlu0 %626
    %v629 = vmul.f32 %v621, %v627
    %631 = vrot.lane.b32.xlu0 %v629, 32
    %v632 = vpop.permute.xlu0 %631
    %v634 = vadd.f32 %v624, %v632
    %v635 = vtanh.pop %v634
    %637 = vrot.lane.b32.xlu0 %v635, 64
    %v638 = vpop.permute.xlu0 %637
    %v640 = vmul.f32 %v621, %v638
    %v641 = vld [vmem:[#allocation2 + $0x5] sm:$0x1]
    %643 = vrot.lane.b32.xlu0 %v640, 32
    %v644 = vpop.permute.xlu0 %643
    %v645 = vsel %vm133, %v644, 0
    %647 = vmatprep.subr.mxu0 0.0
    %648 = vmatpush1.msra.mxu0 %v128
    %649 = vmatprep.subr.mxu0 0.0
    %650 = vmatpush1.msra.mxu0 %v129
    %651 = vmatprep.subr.mxu0 0.0
    %652 = vmatpush1.msra.mxu0 %v130
    %653 = vmatprep.subr.mxu0 0.0
    %654 = vmatpush1.msra.mxu0 %v131
    %655 = vmatprep.subr.mxu0 0.0
    %656 = vmatpush1.msra.mxu0 0.0
    %657 = vmatprep.subr.mxu0 0.0
    %658 = vmatpush1.msra.mxu0 0.0
    %659 = vmatprep.subr.mxu0 0.0
    %660 = vmatpush1.msra.mxu0 0.0
    %661 = vmatprep.subr.mxu0 0.0
    %662 = vmatpush1.msra.mxu0 0.0
    %663 = vmatprep.subr.mxu0 0.0
    %664 = vmatpush1.msra.mxu0 0.0
    %665 = vmatprep.subr.mxu0 0.0
    %666 = vmatpush1.msra.mxu0 0.0
    %667 = vmatprep.subr.mxu0 0.0
    %668 = vmatpush1.msra.mxu0 0.0
    %669 = vmatprep.subr.mxu0 0.0
    %670 = vmatpush1.msra.mxu0 0.0
    %671 = vmatprep.subr.mxu0 0.0
    %672 = vmatpush1.msra.mxu0 0.0
    %673 = vmatprep.subr.mxu0 0.0
    %674 = vmatpush1.msra.mxu0 0.0
    %675 = vmatprep.subr.mxu0 0.0
    %676 = vmatpush1.msra.mxu0 0.0
    %677 = vmatprep.subr.mxu0 0.0
    %678 = vmatpush1.msra.mxu0 0.0
    %679 = vmatprep.subr.mxu0 0.0
    %680 = vmatpush1.msra.mxu0 0.0
    %681 = vmatprep.subr.mxu0 0.0
    %682 = vmatpush1.msra.mxu0 0.0
    %683 = vmatprep.subr.mxu0 0.0
    %684 = vmatpush1.msra.mxu0 0.0
    %685 = vmatprep.subr.mxu0 0.0
    %686 = vmatpush1.msra.mxu0 0.0
    %687 = vmatprep.subr.mxu0 0.0
    %688 = vmatpush1.msra.mxu0 0.0
    %689 = vmatprep.subr.mxu0 0.0
    %690 = vmatpush1.msra.mxu0 0.0
    %691 = vmatprep.subr.mxu0 0.0
    %692 = vmatpush1.msra.mxu0 0.0
    %693 = vmatprep.subr.mxu0 0.0
    %694 = vmatpush1.msra.mxu0 0.0
    %695 = vmatprep.subr.mxu0 0.0
    %696 = vmatpush1.msra.mxu0 0.0
    %697 = vmatprep.subr.mxu0 0.0
    %698 = vmatpush1.msra.mxu0 0.0
    %699 = vmatprep.subr.mxu0 0.0
    %700 = vmatpush1.msra.mxu0 0.0
    %701 = vmatprep.subr.mxu0 0.0
    %702 = vmatpush1.msra.mxu0 0.0
    %703 = vmatprep.subr.mxu0 0.0
    %704 = vmatpush1.msra.mxu0 0.0
    %705 = vmatprep.subr.mxu0 0.0
    %706 = vmatpush1.msra.mxu0 0.0
    %707 = vmatprep.subr.mxu0 0.0
    %708 = vmatpush1.msra.mxu0 0.0
    %709 = vmatprep.subr.mxu0 0.0
    %710 = vmatpush1.msra.mxu0 0.0
    %711 = vmatprep.mubr.f32.mxu0 0.0
    %712 = vmatmul.mubr.f32.gmra.mrb[0].mxu0 %v645
    %v713 = vpop.f32.mrb[0].mxu0
    %v714 = vadd.f32 0.0, %v713
    %v715 = vpop.f32.mrb[0].mxu0
    %716 = vdwg.mxu0
    %v717 = vadd.f32 %v641, %v714
    %v718 = vxor.u32 %v717, 2147483648
    %v719 = vmul.f32 %v718, 1.442695
    %v720 = vpow.pop %v719
    %v721 = vadd.f32 %v720, 1.0
    %v722 = vrcp.pop %v721
    %v723 = vmul.f32 1.0, %v722
    %v724 = vmul.f32 %v723, 2.0
    %v725 = vsub.f32 %v724, 1.0
    %v726 = vmul.f32 %v723, %v634
    %728 = vrot.lane.b32.xlu0 %v725, 64
    %v729 = vpop.permute.xlu0 %728
    %v731 = vmul.f32 %v723, %v729
    %733 = vrot.lane.b32.xlu0 %v731, 32
    %v734 = vpop.permute.xlu0 %733
    %v736 = vadd.f32 %v726, %v734
    %v737 = vtanh.pop %v736
    %739 = vrot.lane.b32.xlu0 %v737, 64
    %v740 = vpop.permute.xlu0 %739
    %v742 = vmul.f32 %v723, %v740
    %v743 = vld [vmem:[#allocation2 + $0x6] sm:$0x1]
    %745 = vrot.lane.b32.xlu0 %v742, 32
    %v746 = vpop.permute.xlu0 %745
    %v747 = vsel %vm133, %v746, 0
    %749 = vmatprep.subr.mxu0 0.0
    %750 = vmatpush1.msra.mxu0 %v128
    %751 = vmatprep.subr.mxu0 0.0
    %752 = vmatpush1.msra.mxu0 %v129
    %753 = vmatprep.subr.mxu0 0.0
    %754 = vmatpush1.msra.mxu0 %v130
    %755 = vmatprep.subr.mxu0 0.0
    %756 = vmatpush1.msra.mxu0 %v131
    %757 = vmatprep.subr.mxu0 0.0
    %758 = vmatpush1.msra.mxu0 0.0
    %759 = vmatprep.subr.mxu0 0.0
    %760 = vmatpush1.msra.mxu0 0.0
    %761 = vmatprep.subr.mxu0 0.0
    %762 = vmatpush1.msra.mxu0 0.0
    %763 = vmatprep.subr.mxu0 0.0
    %764 = vmatpush1.msra.mxu0 0.0
    %765 = vmatprep.subr.mxu0 0.0
    %766 = vmatpush1.msra.mxu0 0.0
    %767 = vmatprep.subr.mxu0 0.0
    %768 = vmatpush1.msra.mxu0 0.0
    %769 = vmatprep.subr.mxu0 0.0
    %770 = vmatpush1.msra.mxu0 0.0
    %771 = vmatprep.subr.mxu0 0.0
    %772 = vmatpush1.msra.mxu0 0.0
    %773 = vmatprep.subr.mxu0 0.0
    %774 = vmatpush1.msra.mxu0 0.0
    %775 = vmatprep.subr.mxu0 0.0
    %776 = vmatpush1.msra.mxu0 0.0
    %777 = vmatprep.subr.mxu0 0.0
    %778 = vmatpush1.msra.mxu0 0.0
    %779 = vmatprep.subr.mxu0 0.0
    %780 = vmatpush1.msra.mxu0 0.0
    %781 = vmatprep.subr.mxu0 0.0
    %782 = vmatpush1.msra.mxu0 0.0
    %783 = vmatprep.subr.mxu0 0.0
    %784 = vmatpush1.msra.mxu0 0.0
    %785 = vmatprep.subr.mxu0 0.0
    %786 = vmatpush1.msra.mxu0 0.0
    %787 = vmatprep.subr.mxu0 0.0
    %788 = vmatpush1.msra.mxu0 0.0
    %789 = vmatprep.subr.mxu0 0.0
    %790 = vmatpush1.msra.mxu0 0.0
    %791 = vmatprep.subr.mxu0 0.0
    %792 = vmatpush1.msra.mxu0 0.0
    %793 = vmatprep.subr.mxu0 0.0
    %794 = vmatpush1.msra.mxu0 0.0
    %795 = vmatprep.subr.mxu0 0.0
    %796 = vmatpush1.msra.mxu0 0.0
    %797 = vmatprep.subr.mxu0 0.0
    %798 = vmatpush1.msra.mxu0 0.0
    %799 = vmatprep.subr.mxu0 0.0
    %800 = vmatpush1.msra.mxu0 0.0
    %801 = vmatprep.subr.mxu0 0.0
    %802 = vmatpush1.msra.mxu0 0.0
    %803 = vmatprep.subr.mxu0 0.0
    %804 = vmatpush1.msra.mxu0 0.0
    %805 = vmatprep.subr.mxu0 0.0
    %806 = vmatpush1.msra.mxu0 0.0
    %807 = vmatprep.subr.mxu0 0.0
    %808 = vmatpush1.msra.mxu0 0.0
    %809 = vmatprep.subr.mxu0 0.0
    %810 = vmatpush1.msra.mxu0 0.0
    %811 = vmatprep.subr.mxu0 0.0
    %812 = vmatpush1.msra.mxu0 0.0
    %813 = vmatprep.mubr.f32.mxu0 0.0
    %814 = vmatmul.mubr.f32.gmra.mrb[0].mxu0 %v747
    %v815 = vpop.f32.mrb[0].mxu0
    %v816 = vadd.f32 0.0, %v815
    %v817 = vpop.f32.mrb[0].mxu0
    %818 = vdwg.mxu0
    %v819 = vadd.f32 %v743, %v816
    %v820 = vxor.u32 %v819, 2147483648
    %v821 = vmul.f32 %v820, 1.442695
    %v822 = vpow.pop %v821
    %v823 = vadd.f32 %v822, 1.0
    %v824 = vrcp.pop %v823
    %v825 = vmul.f32 1.0, %v824
    %v826 = vmul.f32 %v825, 2.0
    %v827 = vsub.f32 %v826, 1.0
    %v828 = vmul.f32 %v825, %v736
    %830 = vrot.lane.b32.xlu0 %v827, 64
    %v831 = vpop.permute.xlu0 %830
    %v833 = vmul.f32 %v825, %v831
    %835 = vrot.lane.b32.xlu0 %v833, 32
    %v836 = vpop.permute.xlu0 %835
    %v838 = vadd.f32 %v828, %v836
    %v839 = vtanh.pop %v838
    %841 = vrot.lane.b32.xlu0 %v839, 64
    %v842 = vpop.permute.xlu0 %841
    %v844 = vmul.f32 %v825, %v842
    %v845 = vld [vmem:[#allocation2 + $0x7] sm:$0x1]
    %847 = vrot.lane.b32.xlu0 %v844, 32
    %v848 = vpop.permute.xlu0 %847
    %v849 = vsel %vm133, %v848, 0
    %851 = vmatprep.subr.mxu0 0.0
    %852 = vmatpush1.msra.mxu0 %v128
    %853 = vmatprep.subr.mxu0 0.0
    %854 = vmatpush1.msra.mxu0 %v129
    %855 = vmatprep.subr.mxu0 0.0
    %856 = vmatpush1.msra.mxu0 %v130
    %857 = vmatprep.subr.mxu0 0.0
    %858 = vmatpush1.msra.mxu0 %v131
    %859 = vmatprep.subr.mxu0 0.0
    %860 = vmatpush1.msra.mxu0 0.0
    %861 = vmatprep.subr.mxu0 0.0
    %862 = vmatpush1.msra.mxu0 0.0
    %863 = vmatprep.subr.mxu0 0.0
    %864 = vmatpush1.msra.mxu0 0.0
    %865 = vmatprep.subr.mxu0 0.0
    %866 = vmatpush1.msra.mxu0 0.0
    %867 = vmatprep.subr.mxu0 0.0
    %868 = vmatpush1.msra.mxu0 0.0
    %869 = vmatprep.subr.mxu0 0.0
    %870 = vmatpush1.msra.mxu0 0.0
    %871 = vmatprep.subr.mxu0 0.0
    %872 = vmatpush1.msra.mxu0 0.0
    %873 = vmatprep.subr.mxu0 0.0
    %874 = vmatpush1.msra.mxu0 0.0
    %875 = vmatprep.subr.mxu0 0.0
    %876 = vmatpush1.msra.mxu0 0.0
    %877 = vmatprep.subr.mxu0 0.0
    %878 = vmatpush1.msra.mxu0 0.0
    %879 = vmatprep.subr.mxu0 0.0
    %880 = vmatpush1.msra.mxu0 0.0
    %881 = vmatprep.subr.mxu0 0.0
    %882 = vmatpush1.msra.mxu0 0.0
    %883 = vmatprep.subr.mxu0 0.0
    %884 = vmatpush1.msra.mxu0 0.0
    %885 = vmatprep.subr.mxu0 0.0
    %886 = vmatpush1.msra.mxu0 0.0
    %887 = vmatprep.subr.mxu0 0.0
    %888 = vmatpush1.msra.mxu0 0.0
    %889 = vmatprep.subr.mxu0 0.0
    %890 = vmatpush1.msra.mxu0 0.0
    %891 = vmatprep.subr.mxu0 0.0
    %892 = vmatpush1.msra.mxu0 0.0
    %893 = vmatprep.subr.mxu0 0.0
    %894 = vmatpush1.msra.mxu0 0.0
    %895 = vmatprep.subr.mxu0 0.0
    %896 = vmatpush1.msra.mxu0 0.0
    %897 = vmatprep.subr.mxu0 0.0
    %898 = vmatpush1.msra.mxu0 0.0
    %899 = vmatprep.subr.mxu0 0.0
    %900 = vmatpush1.msra.mxu0 0.0
    %901 = vmatprep.subr.mxu0 0.0
    %902 = vmatpush1.msra.mxu0 0.0
    %903 = vmatprep.subr.mxu0 0.0
    %904 = vmatpush1.msra.mxu0 0.0
    %905 = vmatprep.subr.mxu0 0.0
    %906 = vmatpush1.msra.mxu0 0.0
    %907 = vmatprep.subr.mxu0 0.0
    %908 = vmatpush1.msra.mxu0 0.0
    %909 = vmatprep.subr.mxu0 0.0
    %910 = vmatpush1.msra.mxu0 0.0
    %911 = vmatprep.subr.mxu0 0.0
    %912 = vmatpush1.msra.mxu0 0.0
    %913 = vmatprep.subr.mxu0 0.0
    %914 = vmatpush1.msra.mxu0 0.0
    %915 = vmatprep.mubr.f32.mxu0 0.0
    %916 = vmatmul.mubr.f32.gmra.mrb[0].mxu0 %v849
    %v917 = vpop.f32.mrb[0].mxu0
    %v918 = vadd.f32 0.0, %v917
    %v919 = vpop.f32.mrb[0].mxu0
    %920 = vdwg.mxu0
    %v921 = vadd.f32 %v845, %v918
    %v922 = vxor.u32 %v921, 2147483648
    %v923 = vmul.f32 %v922, 1.442695
    %v924 = vpow.pop %v923
    %v925 = vadd.f32 %v924, 1.0
    %v926 = vrcp.pop %v925
    %v927 = vmul.f32 1.0, %v926
    %v928 = vmul.f32 %v927, 2.0
    %v929 = vsub.f32 %v928, 1.0
    %v930 = vmul.f32 %v927, %v838
    %932 = vrot.lane.b32.xlu0 %v929, 64
    %v933 = vpop.permute.xlu0 %932
    %v935 = vmul.f32 %v927, %v933
    %937 = vrot.lane.b32.xlu0 %v935, 32
    %v938 = vpop.permute.xlu0 %937
    %v940 = vadd.f32 %v930, %v938
    %v941 = vtanh.pop %v940
    %943 = vrot.lane.b32.xlu0 %v941, 64
    %v944 = vpop.permute.xlu0 %943
    %v946 = vmul.f32 %v927, %v944
    %v947 = vld [vmem:[%s4] sm:$0x1]
    %v949 = vlaneseq
    %v950 = vshrl.u32 %v949, 7
    %v951 = vsub.s32 0, %v950
    %v952 = vrot.slane %v947, %v951
    %953 = vrot.lane.b32.xlu0 %v952, 96
    %v954 = vpop.permute.xlu0 %953
    %v956 = vmul.f32 %v946, %v954
    %958 = vrot.lane.b32.xlu0 %v956, 32
    %v959 = vpop.permute.xlu0 %958
    %vm961 = vcmask 253952
    %v962 = vsel %vm961, %v959, 0.0
    %963 = vadd.xlane.f32.xlu0 %v962
    %v964 = vpop.xlane.xlu0 %963
    %v965 = vld [vmem:[#allocation3] sm:$0x1]
    %v966 = vadd.f32 %v964, %v965
    %vm967 = vcmask 0
    %968 = vst.msk [vmem:[#allocation7] sm:$0x1] %vm967, %v966
    // Predicated region
    $region30: #{tpu_custom_call.1} parent=1 // pred_check
      _
    $region31: #{tpu_custom_call.1} parent=1 // pred_check_branch
      %970 = sbr.rel (0) target = $region33
    $region32: #{tpu_custom_call.1} parent=1 // pred_region
      %s972 = ssub.s32 16, 16
      %973 = vsyncadd [#allocation6], %s972
      %s975 = sshll.u32 [#allocation7], 4
      %s976 = int_to_ptr.vmem [resolvable:$true] %s975
      %978 = dma.vmem_to_hbm [thread:$0]  %s976, 16, %s6, [#allocation6]
    $region33: #{tpu_custom_call.1} parent=1 // pred_fallthru
      _
    // Predicated region
    $region34: #{tpu_custom_call.1} parent=1 // pred_check
      _
    $region35: #{tpu_custom_call.1} parent=1 // pred_check_branch
      %980 = sbr.rel (0) target = $region37
    $region36: #{tpu_custom_call.1} parent=1 // pred_region
      %981 = dma.done [#allocation6], 16
    $region37: #{tpu_custom_call.1} parent=1 // pred_fallthru
      _
    %982 = vsyncpa [#allocation5], 1
    %983 = vsyncpa [#allocation6], 1

</llo_original>
